<compile_context>
chip_gen: v6e
topology: v6e:2x2x1
jax: 0.10.0
libtpu: 0.0.40
codegen_flags: <defaults>
</compile_context>

<pallas_src>
import functools

import jax
import jax.numpy as jnp
from jax.experimental import pallas as pl
from jax.experimental.pallas import tpu as pltpu


def _softsort_kernel(s_ref, c_ref, out_ref, *, tau, hard, n_total, tj):
    """Grid = (batch_tiles, center_tiles).

    s_ref  : (TB, n)   full score rows (the softmax / k axis, always complete)
    c_ref  : (TB, TJ)  this step's slab of "center" scores (rows of P_hat in
                       unsorted order; the rank permutation is applied at the end)
    out_ref: (TB, n)   accumulator, revisited across the center axis.
    Layout: k / output-position on sublanes, centers j on lanes.
    """
    jt = pl.program_id(1)

    @pl.when(jt == 0)
    def _init():
        out_ref[...] = jnp.zeros_like(out_ref)

    s = s_ref[...].astype(jnp.float32)                       # (TB, n)
    c = c_ref[...].astype(jnp.float32)                       # (TB, TJ)
    tb, n = s.shape

    # f32 index planes (exact for n < 2^24); int iota + convert is the proven path.
    kpos = jax.lax.broadcasted_iota(jnp.int32, (1, n, tj), 1).astype(jnp.float32)
    jidx = (jax.lax.broadcasted_iota(jnp.int32, (1, 1, tj), 2).astype(jnp.float32)
            + (jt * tj).astype(jnp.float32))                  # global center index
    valid = jidx < float(n_total)                             # mask for padded tail

    # One pairwise-difference plane reused by BOTH the rank pass and the softmax.
    diff = s[:, :, None] - c[:, None, :]                      # (TB, n, TJ) = s_k - c_j

    # Lane-axis (over k) reductions routed through the otherwise-idle MXU.
    ones_row = jnp.ones((tb, 1, n), jnp.float32)

    def col_sum(x):                                           # sum over k -> (TB, 1, TJ)
        return jnp.einsum('brk,bkj->brj', ones_row, x,
                          preferred_element_type=jnp.float32)

    # Descending rank of each center (stable tie-break on index); 0/1 counting
    # in f32 makes the MXU reduction exact (integer-valued) at any precision.
    count = jnp.where((diff > 0.0) | ((diff == 0.0) & (kpos < jidx)), 1.0, 0.0)
    rank = col_sum(count)                                     # (TB, 1, TJ)

    if hard:
        # Hard one-hot forward of P_hat @ scores == descending-sorted values,
        # i.e. the center value itself scattered to position rank_j.
        ratio = c[:, None, :]                                 # (TB, 1, TJ)
    else:
        # softmax_k(-(s_k - c_j)^2 / tau) fused with the P_hat @ scores row:
        #   out_j = c_j + (sum_k e * diff) / (sum_k e)
        # Max logit is exactly 0 (k == j), so no max-subtraction is needed;
        # this relies on the centers being untransformed elements of s.
        e = jnp.exp(diff * diff * (-1.0 / tau))               # EUP
        corr = col_sum(e * diff)                              # (TB, 1, TJ)
        den = col_sum(e)                                      # (TB, 1, TJ), >= 1
        ratio = c[:, None, :] + corr / den                    # (TB, 1, TJ)

    # Scatter center j's value to output position rank_j (output position on
    # sublanes, j on lanes -> plain last-axis reduce, no transposes).
    hit = (rank == kpos) & valid                              # (TB, n, TJ)
    contrib = jnp.sum(jnp.where(hit, ratio, 0.0), axis=-1)    # (TB, n)
    out_ref[...] += contrib.astype(out_ref.dtype)


def _physical_vmem_bytes():
    """Best-effort physical VMEM size; conservative (v7x-sized) fallback."""
    try:
        cap = int(getattr(pltpu.get_tpu_info(), "vmem_capacity_bytes", 0))
        if cap > 0:
            return cap
    except Exception:
        pass
    return 64 << 20


def _live_bytes(tb, tj, n):
    # ~8 simultaneously-live (TB, n, TJ) f32 slabs (diff, count, e, e*diff, hit,
    # scatter select, fusion slack) + iota planes + double-buffered in/out blocks.
    return 4 * (8 * tb * tj * n + 2 * tj * n + 6 * tb * n + 2 * tb * tj)


def _pick_tiles(batch, n, budget):
    """(batch tile, center tile) sized to the VMEM budget."""
    # Batch tile: multiple of 8 (or the whole batch when batch <= 8).  Keep the
    # "parallel" batch axis at >= 2 (target ~4) grid steps so both of v7x's
    # TensorCores get work and the in/out blocks pipeline.
    if batch <= 8:
        tb = batch
    else:
        tb = max(8, min(64, 8 * (batch // 32)))
    # Center tile: full n when it fits, otherwise a multiple of 128 (lane
    # constraint of the (TB, TJ) center BlockSpec).
    tj = n
    if n > 128 and _live_bytes(tb, tj, n) > budget:
        tj = 128
        while 2 * tj < n and _live_bytes(tb, 2 * tj, n) <= budget:
            tj *= 2
    while tb > 8 and _live_bytes(tb, tj, n) > budget:
        tb = max(8, (tb // 16) * 8)
    return tb, tj


def soft_sort(scores, tau=1e-4, hard=False, block_sizes=None):
    """Pallas SoftSort_p2 forward.  scores: (B, n) -> (B, n) == (P_hat @ scores)[..., 0]."""
    scores = jnp.asarray(scores, dtype=jnp.float32)
    batch, n = scores.shape

    # Generation-aware VMEM sizing (v7x: ~48 MiB scoped limit, v5e/v6e: ~96 MiB).
    vmem_cap = _physical_vmem_bytes()
    base_limit = min((vmem_cap * 3) // 4, 100 << 20)
    budget = (base_limit * 3) // 5                            # temporaries budget w/ headroom

    if block_sizes is None:
        tb, tj = _pick_tiles(batch, n, budget)
    else:                                                     # explicit override (tests/tuning)
        tb, tj = block_sizes
        tb, tj = min(tb, batch), min(tj, n)

    vmem_limit = int(max(32 << 20,
                         min(vmem_cap - (8 << 20),
                             max(base_limit, (_live_bytes(tb, tj, n) * 3) // 2))))

    nb, nj = pl.cdiv(batch, tb), pl.cdiv(n, tj)
    kernel = functools.partial(_softsort_kernel, tau=float(tau), hard=bool(hard),
                               n_total=n, tj=tj)

    # ~13 VPU ops + ~6 MXU flops per n^2 element on the soft path, ~9 on hard.
    cost = pl.CostEstimate(
        flops=(9 if hard else 19) * batch * n * n,
        transcendentals=0 if hard else batch * n * n,
        bytes_accessed=(nj + 2) * batch * n * 4,
    )

    return pl.pallas_call(
        kernel,
        out_shape=jax.ShapeDtypeStruct((batch, n), jnp.float32),
        grid=(nb, nj),
        in_specs=[pl.BlockSpec((tb, n), lambda b, j: (b, 0)),    # full rows (k axis)
                  pl.BlockSpec((tb, tj), lambda b, j: (b, j))],  # center slab
        out_specs=pl.BlockSpec((tb, n), lambda b, j: (b, 0)),    # revisited accumulator
        compiler_params=pltpu.CompilerParams(
            dimension_semantics=("parallel", "arbitrary"),
            vmem_limit_bytes=vmem_limit,
        ),
        cost_estimate=cost,
    )(scores, scores)


def _soft_sort_ref(scores, tau=1e-4):
    """Pure-JAX replica of the PyTorch module's soft forward (for validation)."""
    s = scores[..., None].astype(jnp.float32)                  # (B, n, 1)
    srt = -jnp.sort(-s, axis=1)                                # descending
    logits = -((jnp.swapaxes(s, 1, 2) - srt) ** 2) / tau       # (B, n, n)
    p = jax.nn.softmax(logits, axis=-1)
    return (p @ s)[..., 0]


if __name__ == "__main__":
    k0, k1 = jax.random.split(jax.random.PRNGKey(0))

    # --- small spec-shaped case: batch=2, n=8 elements to sort per row ------
    scores = jax.random.normal(k0, (2, 8), dtype=jnp.float32)

    out = soft_sort(scores, tau=1e-6, hard=False)
    jax.block_until_ready(out)
    assert out.shape == (2, 8) and out.dtype == jnp.float32
    ref = _soft_sort_ref(scores, tau=1e-6)
    assert jnp.allclose(out, ref, atol=1e-4), (out, ref)
    # With tau=1e-6 the soft permutation is effectively hard -> ~sorted values.
    assert jnp.allclose(out, -jnp.sort(-scores, axis=1), atol=1e-2)

    # Hard-mode forward must be exactly the descending-sorted values.
    out_hard = soft_sort(scores, tau=1e-4, hard=True)
    jax.block_until_ready(out_hard)
    assert jnp.allclose(out_hard, -jnp.sort(-scores, axis=1), atol=1e-5)

    # --- tiled path: batch grid, center grid, partial edge blocks -----------
    scores2 = jax.random.normal(k1, (10, 200), dtype=jnp.float32)
    out2 = soft_sort(scores2, tau=0.25, hard=False, block_sizes=(8, 128))
    jax.block_until_ready(out2)
    ref2 = _soft_sort_ref(scores2, tau=0.25)
    assert jnp.allclose(out2, ref2, atol=2e-2, rtol=1e-2), float(
        jnp.max(jnp.abs(out2 - ref2)))

    print("KERNEL_OK")
</pallas_src>

<mosaic_0001>
module attributes {stable_mosaic.version = 11 : i64} {
  func.func @_softsort_kernel(%arg0: i32, %arg1: i32, %arg2: memref<2x8xf32, #tpu.memory_space<vmem>>, %arg3: memref<2x8xf32, #tpu.memory_space<vmem>>, %arg4: memref<2x8xf32, #tpu.memory_space<vmem>>) attributes {dimension_semantics = [#tpu.dimension_semantics<parallel>, #tpu.dimension_semantics<arbitrary>], iteration_bounds = array<i64: 1, 1>, scalar_prefetch = 0 : i64, scratch_operands = 0 : i64, tpu.core_type = #tpu.core_type<tc>, window_params = [{transform_indices = @transform_0, window_bounds = array<i64: 2, 8>}, {transform_indices = @transform_1, window_bounds = array<i64: 2, 8>}, {transform_indices = @transform_2, window_bounds = array<i64: 2, 8>}]} {
    %c0_i32 = arith.constant 0 : i32
    %0 = arith.cmpi eq, %arg1, %c0_i32 : i32
    %1 = arith.extui %0 : i1 to i32
    %c0_i32_0 = arith.constant 0 : i32
    %2 = arith.cmpi ne, %1, %c0_i32_0 : i32
    scf.if %2 {
      %cst_19 = arith.constant 0.000000e+00 : f32
      %57 = vector.broadcast %cst_19 : f32 to vector<2x8xf32>
      %c0_20 = arith.constant 0 : index
      %c0_21 = arith.constant 0 : index
      %58 = vector.load %arg4[%c0_20, %c0_21] : memref<2x8xf32, #tpu.memory_space<vmem>>, vector<2x8xf32>
      tpu.vector_store %arg4[%c0_20, %c0_21], %57 {strides = array<i32>} : memref<2x8xf32, #tpu.memory_space<vmem>>, vector<2x8xf32>,
    } else {
    }
    %c0 = arith.constant 0 : index
    %c0_1 = arith.constant 0 : index
    %3 = vector.load %arg2[%c0, %c0_1] : memref<2x8xf32, #tpu.memory_space<vmem>>, vector<2x8xf32>
    %c0_2 = arith.constant 0 : index
    %c0_3 = arith.constant 0 : index
    %4 = vector.load %arg3[%c0_2, %c0_3] : memref<2x8xf32, #tpu.memory_space<vmem>>, vector<2x8xf32>
    %5 = tpu.iota {dimensions = array<i32: 1>} : vector<1x8x8xi32>
    %6 = arith.sitofp %5 : vector<1x8x8xi32> to vector<1x8x8xf32>
    %7 = tpu.iota {dimensions = array<i32: 2>} : vector<1x1x8xi32>
    %8 = arith.sitofp %7 : vector<1x1x8xi32> to vector<1x1x8xf32>
    %c8_i32 = arith.constant 8 : i32
    %9 = arith.muli %arg1, %c8_i32 : i32
    %10 = arith.sitofp %9 : i32 to f32
    %11 = vector.broadcast %10 : f32 to vector<1x1x8xf32>
    %12 = arith.addf %8, %11 : vector<1x1x8xf32>
    %cst = arith.constant 8.000000e+00 : f32
    %13 = vector.broadcast %cst : f32 to vector<1x1x8xf32>
    %14 = arith.cmpf olt, %12, %13 : vector<1x1x8xf32>
    %15 = vector.shape_cast %3 : vector<2x8xf32> to vector<2x8x1xf32>
    %16 = vector.shape_cast %4 : vector<2x8xf32> to vector<2x1x8xf32>
    %17 = vector.broadcast %15 : vector<2x8x1xf32> to vector<2x8x8xf32>
    %18 = vector.broadcast %16 : vector<2x1x8xf32> to vector<2x8x8xf32>
    %19 = arith.subf %17, %18 : vector<2x8x8xf32>
    %cst_4 = arith.constant 1.000000e+00 : f32
    %20 = vector.broadcast %cst_4 : f32 to vector<2x1x8xf32>
    %cst_5 = arith.constant 0.000000e+00 : f32
    %21 = vector.broadcast %cst_5 : f32 to vector<2x8x8xf32>
    %22 = arith.cmpf ogt, %19, %21 : vector<2x8x8xf32>
    %cst_6 = arith.constant 0.000000e+00 : f32
    %23 = vector.broadcast %cst_6 : f32 to vector<2x8x8xf32>
    %24 = arith.cmpf oeq, %19, %23 : vector<2x8x8xf32>
    %25 = vector.broadcast %12 : vector<1x1x8xf32> to vector<1x8x8xf32>
    %26 = arith.cmpf olt, %6, %25 : vector<1x8x8xf32>
    %27 = vector.broadcast %26 : vector<1x8x8xi1> to vector<2x8x8xi1>
    %28 = arith.andi %24, %27 : vector<2x8x8xi1>
    %29 = arith.ori %22, %28 : vector<2x8x8xi1>
    %cst_7 = arith.constant 1.000000e+00 : f32
    %cst_8 = arith.constant 0.000000e+00 : f32
    %30 = vector.broadcast %cst_7 : f32 to vector<2x8x8xf32>
    %31 = vector.broadcast %cst_8 : f32 to vector<2x8x8xf32>
    %32 = arith.select %29, %30, %31 : vector<2x8x8xi1>, vector<2x8x8xf32>
    "tpu.trace_start"() <{level = 10 : i32, message = "brk,bkj->brj"}> : () -> ()
    %cst_9 = arith.constant dense<0.000000e+00> : vector<2x1x8xf32>
    %33 = tpu.matmul %20, %32, %cst_9 {dimension_numbers = #tpu.dot_dimension_numbers<[2], [1], [1], [2], [0, 0, 0, 1, 1, 2], [0], [0]>} : vector<2x1x8xf32>, vector<2x8x8xf32>, vector<2x1x8xf32> -> vector<2x1x8xf32>
    "tpu.trace_stop"() : () -> ()
    %34 = arith.mulf %19, %19 : vector<2x8x8xf32>
    %cst_10 = arith.constant -1.000000e+06 : f32
    %35 = vector.broadcast %cst_10 : f32 to vector<2x8x8xf32>
    %36 = arith.mulf %34, %35 : vector<2x8x8xf32>
    %37 = math.exp %36 : vector<2x8x8xf32>
    %38 = arith.mulf %37, %19 : vector<2x8x8xf32>
    "tpu.trace_start"() <{level = 10 : i32, message = "brk,bkj->brj"}> : () -> ()
    %cst_11 = arith.constant dense<0.000000e+00> : vector<2x1x8xf32>
    %39 = tpu.matmul %20, %38, %cst_11 {dimension_numbers = #tpu.dot_dimension_numbers<[2], [1], [1], [2], [0, 0, 0, 1, 1, 2], [0], [0]>} : vector<2x1x8xf32>, vector<2x8x8xf32>, vector<2x1x8xf32> -> vector<2x1x8xf32>
    %cst_12 = arith.constant dense<0.000000e+00> : vector<2x1x8xf32>
    %40 = tpu.matmul %20, %37, %cst_12 {dimension_numbers = #tpu.dot_dimension_numbers<[2], [1], [1], [2], [0, 0, 0, 1, 1, 2], [0], [0]>} : vector<2x1x8xf32>, vector<2x8x8xf32>, vector<2x1x8xf32> -> vector<2x1x8xf32>
    "tpu.trace_stop"() : () -> ()
    %41 = vector.shape_cast %4 : vector<2x8xf32> to vector<2x1x8xf32>
    %42 = arith.divf %39, %40 : vector<2x1x8xf32>
    %43 = arith.addf %41, %42 : vector<2x1x8xf32>
    %44 = vector.broadcast %33 : vector<2x1x8xf32> to vector<2x8x8xf32>
    %45 = vector.broadcast %6 : vector<1x8x8xf32> to vector<2x8x8xf32>
    %46 = arith.cmpf oeq, %44, %45 : vector<2x8x8xf32>
    %47 = vector.broadcast %14 : vector<1x1x8xi1> to vector<2x8x8xi1>
    %48 = arith.andi %46, %47 : vector<2x8x8xi1>
    %cst_13 = arith.constant 0.000000e+00 : f32
    %49 = vector.shape_cast %43 : vector<2x1x8xf32> to vector<2x1x8xf32>
    %50 = vector.broadcast %49 : vector<2x1x8xf32> to vector<2x8x8xf32>
    %51 = vector.broadcast %cst_13 : f32 to vector<2x8x8xf32>
    %52 = arith.select %48, %50, %51 : vector<2x8x8xi1>, vector<2x8x8xf32>
    %cst_14 = arith.constant dense<0.000000e+00> : vector<2x8xf32>
    %53 = vector.multi_reduction <add>, %52, %cst_14 [2] : vector<2x8x8xf32> to vector<2x8xf32>
    %c0_15 = arith.constant 0 : index
    %c0_16 = arith.constant 0 : index
    %54 = vector.load %arg4[%c0_15, %c0_16] : memref<2x8xf32, #tpu.memory_space<vmem>>, vector<2x8xf32>
    %55 = arith.addf %54, %53 : vector<2x8xf32>
    %c0_17 = arith.constant 0 : index
    %c0_18 = arith.constant 0 : index
    %56 = vector.load %arg4[%c0_17, %c0_18] : memref<2x8xf32, #tpu.memory_space<vmem>>, vector<2x8xf32>
    tpu.vector_store %arg4[%c0_17, %c0_18], %55 {strides = array<i32>} : memref<2x8xf32, #tpu.memory_space<vmem>>, vector<2x8xf32>,
    return
  }
  func.func @transform_0(%arg0: i32, %arg1: i32) -> (i32, i32) {
    %c0_i32 = arith.constant 0 : i32
    %c0_i32_0 = arith.constant 0 : i32
    return %arg0, %c0_i32 : i32, i32
  }
  func.func @transform_1(%arg0: i32, %arg1: i32) -> (i32, i32) {
    %c0_i32 = arith.constant 0 : i32
    return %arg0, %arg1 : i32, i32
  }
  func.func @transform_2(%arg0: i32, %arg1: i32) -> (i32, i32) {
    %c0_i32 = arith.constant 0 : i32
    %c0_i32_0 = arith.constant 0 : i32
    return %arg0, %c0_i32 : i32, i32
  }
}

</mosaic_0001>

<llo_original>
// kernel: tpu_custom_call.1
$region0: #{tpu_custom_call.1}
  #allocation0 [shape = 'u32[]', space=smem, size = 0x4, offset = 0x4, fixed_abs, tag = 'smem constant byte address 0x4 - core index']
  #allocation1 [shape = 'u32[144,128]{1,0:T(1,128)}', space=vmem, size = 0x12000, scoped, tag = 'internal scratch']
  %s0 = inlined_call_operand.hbm [shape: f32[2,8], index: 0, kind: input, shape index: {}]
  %s1 = inlined_call_operand.hbm [shape: f32[2,8], index: 1, kind: input, shape index: {}]
  %s2 = inlined_call_operand.hbm [shape: f32[2,8], index: 2, kind: output, shape index: {}]
  %s3 = sld [smem:[#allocation0]]
  $region30: #{tpu_custom_call.1} parent=0
    _
  %s5 = ssub.s32 1, %s3
  %s6 = scalar_select 0, %s5, %s3
  $region1: #{tpu_custom_call.1} parent=0
    #allocation2 [shape = 'u8[1024]{0}', space=vmem, size = 0x400, scoped, tag = 'input window, operand 0, single buffered']
    #allocation3 [shape = 's32[1]{0}', space=sflag, size = 0x4, scoped, tag = 'scoped memory for tpu_custom_call.1']
    #allocation4 [shape = 's32[1]{0}', space=sflag, size = 0x4, scoped, tag = 'scoped memory for tpu_custom_call.1']
    #allocation5 [shape = 'u8[1024]{0}', space=vmem, size = 0x400, scoped, tag = 'input window, operand 1, single buffered']
    #allocation6 [shape = 's32[1]{0}', space=sflag, size = 0x4, scoped, tag = 'scoped memory for tpu_custom_call.1']
    #allocation7 [shape = 'u8[1024]{0}', space=vmem, size = 0x400, scoped, tag = 'output window, operand 0, single buffered']
    %7 = vsyncpa [#allocation3], 0
    %8 = vsyncpa [#allocation6], 0
    %9 = vsyncpa [#allocation4], 0
    // Predicated region
    $region2: #{tpu_custom_call.1} parent=1 // pred_check
      _
    $region3: #{tpu_custom_call.1} parent=1 // pred_check_branch
      %11 = sbr.rel (0) target = $region5
    $region4: #{tpu_custom_call.1} parent=1 // pred_region
      %s13 = ssub.s32 32, 32
      %14 = vsyncadd [#allocation3], %s13
      %s16 = sshll.u32 [#allocation2], 4
      %s17 = int_to_ptr.vmem [resolvable:$true] %s16
      %19 = dma.hbm_to_vmem [thread:$0]  %s0, 32, %s17, [#allocation3]
    $region5: #{tpu_custom_call.1} parent=1 // pred_fallthru
      _
    // Predicated region
    $region6: #{tpu_custom_call.1} parent=1 // pred_check
      _
    $region7: #{tpu_custom_call.1} parent=1 // pred_check_branch
      %21 = sbr.rel (0) target = $region9
    $region8: #{tpu_custom_call.1} parent=1 // pred_region
      %s23 = ssub.s32 32, 32
      %24 = vsyncadd [#allocation6], %s23
      %s26 = sshll.u32 [#allocation5], 4
      %s27 = int_to_ptr.vmem [resolvable:$true] %s26
      %29 = dma.hbm_to_vmem [thread:$0]  %s1, 32, %s27, [#allocation6]
    $region9: #{tpu_custom_call.1} parent=1 // pred_fallthru
      _
    // Predicated region
    $region10: #{tpu_custom_call.1} parent=1 // pred_check
      _
    $region11: #{tpu_custom_call.1} parent=1 // pred_check_branch
      %31 = sbr.rel (0) target = $region13
    $region12: #{tpu_custom_call.1} parent=1 // pred_region
      %32 = dma.done [#allocation3], 32
    $region13: #{tpu_custom_call.1} parent=1 // pred_fallthru
      _
    // Predicated region
    $region14: #{tpu_custom_call.1} parent=1 // pred_check
      _
    $region15: #{tpu_custom_call.1} parent=1 // pred_check_branch
      %34 = sbr.rel (0) target = $region17
    $region16: #{tpu_custom_call.1} parent=1 // pred_region
      %35 = dma.done [#allocation6], 32
    $region17: #{tpu_custom_call.1} parent=1 // pred_fallthru
      _
    %p36 = scmp.eq.s32.totalorder 0, 0
    // Predicated region
    $region18: #{tpu_custom_call.1} parent=1 // pred_check
      %p37 = pneg %p36
    $region19: #{tpu_custom_call.1} parent=1 // pred_check_branch
      %39 = sbr.rel (%p37) target = $region21
    $region20: #{tpu_custom_call.1} parent=1 // pred_region
      %vm40 = vcmask 58368
      %41 = vst.msk [vmem:[#allocation7] sm:$0x3] %vm40, 0.0
    $region21: #{tpu_custom_call.1} parent=1 // pred_fallthru
      _
    %v42 = vld [vmem:[#allocation2] sm:$0x3]
    %v43 = vld [vmem:[#allocation5] sm:$0x3]
    %v44 = vlaneseq
    %v45 = vshrl.u32 %v44, 7
    %v46 = vcvt.s32.f32 %v45
    %v47 = vlaneseq
    %v48 = vand.u32 %v47, 127
    %v49 = vcvt.s32.f32 %v48
    %s50 = smul.u32 0, 8
    %s51 = scvt.s32.f32 %s50
    %v52 = vstv %s51
    %v53 = vadd.f32 %v49, %v52
    %vm54 = vcmp.lt.f32.partialorder %v53, 8.0
    %v55 = vlaneseq
    %v56 = vshrl.u32 %v55, 7
    %v57 = vsub.s32 0, %v56
    %v58 = vrot.slane %v42, %v57
    %60 = vbcast.lane.b32.xlu0 %v58, 256
    %v61 = vpop.permute.xlu0 %60
    %v62 = vlaneseq
    %v63 = vshrl.u32 %v62, 7
    %v64 = vsub.s32 1, %v63
    %v65 = vrot.slane %v42, %v64
    %67 = vbcast.lane.b32.xlu0 %v65, 256
    %v68 = vpop.permute.xlu0 %67
    %v71 = vunpack.c.l.s4 1966171168
    %v72 = vunpack.c.0.s8 %v71
    %v73 = vlaneseq
    %v74 = vshrl.u32 %v73, 7
    %v75 = vsub.s32 %v72, %v74
    %v76 = vrot.slane %v43, %v75
    %v77 = vcombine.high %v76, %v76
    %v79 = vunpack.c.l.s4 1966171168
    %v80 = vunpack.c.0.s8 %v79
    %v81 = vlaneseq
    %v82 = vshrl.u32 %v81, 7
    %v83 = vsub.s32 %v80, %v82
    %v84 = vrot.slane %v76, %v83
    %v86 = vunpack.c.l.s4 1966171168
    %v87 = vunpack.c.0.s8 %v86
    %v88 = vlaneseq
    %v89 = vshrl.u32 %v88, 7
    %v90 = vsub.s32 %v87, %v89
    %v91 = vrot.slane %v77, %v90
    %v94 = vlaneseq
    %v95 = vshrl.u32 %v94, 7
    %v96 = vsub.s32 0, %v95
    %v97 = vrot.slane %v84, %v96
    %v98 = vlaneseq
    %v99 = vshrl.u32 %v98, 7
    %v100 = vsub.s32 0, %v99
    %v101 = vrot.slane %v91, %v100
    %v104 = vsub.f32 %v61, %v97
    %v105 = vsub.f32 %v68, %v101
    %vm106 = vcmp.gt.f32.partialorder %v104, 0.0
    %vm107 = vcmp.gt.f32.partialorder %v105, 0.0
    %vm108 = vcmp.eq.f32.partialorder %v104, 0.0
    %vm109 = vcmp.eq.f32.partialorder %v105, 0.0
    %vm110 = vcmp.lt.f32.partialorder %v46, %v53
    %v111 = vsel %vm110, 1, 0
    %vm112 = vcmp.eq.s32.totalorder %v111, 1
    %vm113 = vmand %vm108, %vm112
    %vm114 = vmand %vm109, %vm112
    %vm115 = vmor %vm106, %vm113
    %vm116 = vmor %vm107, %vm114
    %v117 = vsel %vm115, 1.0, 0.0
    %v118 = vsel %vm116, 1.0, 0.0
    %vm119 = vcmask 64512
    %v121 = vsel %vm119, 1.0, 0
    %123 = vmatprep.subr.mxu0 0.0
    %124 = vmatpush1.msra.mxu0 0.0
    %125 = vmatprep.subr.mxu0 0.0
    %126 = vmatpush1.msra.mxu0 0.0
    %127 = vmatprep.subr.mxu0 0.0
    %128 = vmatpush1.msra.mxu0 0.0
    %129 = vmatprep.subr.mxu0 0.0
    %130 = vmatpush1.msra.mxu0 0.0
    %131 = vmatprep.subr.mxu0 0.0
    %132 = vmatpush1.msra.mxu0 0.0
    %133 = vmatprep.subr.mxu0 0.0
    %134 = vmatpush1.msra.mxu0 0.0
    %135 = vmatprep.subr.mxu0 0.0
    %136 = vmatpush1.msra.mxu0 0.0
    %137 = vmatprep.subr.mxu0 0.0
    %138 = vmatpush1.msra.mxu0 0.0
    %139 = vmatprep.subr.mxu0 0.0
    %140 = vmatpush1.msra.mxu0 0.0
    %141 = vmatprep.subr.mxu0 0.0
    %142 = vmatpush1.msra.mxu0 0.0
    %143 = vmatprep.subr.mxu0 0.0
    %144 = vmatpush1.msra.mxu0 0.0
    %145 = vmatprep.subr.mxu0 0.0
    %146 = vmatpush1.msra.mxu0 0.0
    %147 = vmatprep.subr.mxu0 0.0
    %148 = vmatpush1.msra.mxu0 0.0
    %149 = vmatprep.subr.mxu0 0.0
    %150 = vmatpush1.msra.mxu0 0.0
    %151 = vmatprep.subr.mxu0 0.0
    %152 = vmatpush1.msra.mxu0 0.0
    %153 = vmatprep.subr.mxu0 0.0
    %154 = vmatpush1.msra.mxu0 %v117
    %155 = vmatprep.subr.mxu0 0.0
    %156 = vmatpush2.msra.mxu0 0.0
    %157 = vmatprep.subr.mxu0 0.0
    %158 = vmatpush2.msra.mxu0 0.0
    %159 = vmatprep.subr.mxu0 0.0
    %160 = vmatpush2.msra.mxu0 0.0
    %161 = vmatprep.subr.mxu0 0.0
    %162 = vmatpush2.msra.mxu0 0.0
    %163 = vmatprep.subr.mxu0 0.0
    %164 = vmatpush2.msra.mxu0 0.0
    %165 = vmatprep.subr.mxu0 0.0
    %166 = vmatpush2.msra.mxu0 0.0
    %167 = vmatprep.subr.mxu0 0.0
    %168 = vmatpush2.msra.mxu0 0.0
    %169 = vmatprep.subr.mxu0 0.0
    %170 = vmatpush2.msra.mxu0 0.0
    %171 = vmatprep.subr.mxu0 0.0
    %172 = vmatpush2.msra.mxu0 0.0
    %173 = vmatprep.subr.mxu0 0.0
    %174 = vmatpush2.msra.mxu0 0.0
    %175 = vmatprep.subr.mxu0 0.0
    %176 = vmatpush2.msra.mxu0 0.0
    %177 = vmatprep.subr.mxu0 0.0
    %178 = vmatpush2.msra.mxu0 0.0
    %179 = vmatprep.subr.mxu0 0.0
    %180 = vmatpush2.msra.mxu0 0.0
    %181 = vmatprep.subr.mxu0 0.0
    %182 = vmatpush2.msra.mxu0 0.0
    %183 = vmatprep.subr.mxu0 0.0
    %184 = vmatpush2.msra.mxu0 0.0
    %185 = vmatprep.subr.mxu0 0.0
    %186 = vmatpush2.msra.mxu0 0.0
    %187 = vmatprep.mubr.f32.mxu0 0.0
    %188 = vmatmul.mubr.f32.gmra.mxu0 %v121
    %v189 = vpop.f32.mrf.mxu0
    %v190 = vadd.f32 0.0, %v189
    %v191 = vpop.f32.mrf.mxu0
    %192 = vdwg.mxu0
    %193 = vmatprep.subr.mxu0 0.0
    %194 = vmatpush1.msra.mxu0 0.0
    %195 = vmatprep.subr.mxu0 0.0
    %196 = vmatpush1.msra.mxu0 0.0
    %197 = vmatprep.subr.mxu0 0.0
    %198 = vmatpush1.msra.mxu0 0.0
    %199 = vmatprep.subr.mxu0 0.0
    %200 = vmatpush1.msra.mxu0 0.0
    %201 = vmatprep.subr.mxu0 0.0
    %202 = vmatpush1.msra.mxu0 0.0
    %203 = vmatprep.subr.mxu0 0.0
    %204 = vmatpush1.msra.mxu0 0.0
    %205 = vmatprep.subr.mxu0 0.0
    %206 = vmatpush1.msra.mxu0 0.0
    %207 = vmatprep.subr.mxu0 0.0
    %208 = vmatpush1.msra.mxu0 0.0
    %209 = vmatprep.subr.mxu0 0.0
    %210 = vmatpush1.msra.mxu0 0.0
    %211 = vmatprep.subr.mxu0 0.0
    %212 = vmatpush1.msra.mxu0 0.0
    %213 = vmatprep.subr.mxu0 0.0
    %214 = vmatpush1.msra.mxu0 0.0
    %215 = vmatprep.subr.mxu0 0.0
    %216 = vmatpush1.msra.mxu0 0.0
    %217 = vmatprep.subr.mxu0 0.0
    %218 = vmatpush1.msra.mxu0 0.0
    %219 = vmatprep.subr.mxu0 0.0
    %220 = vmatpush1.msra.mxu0 0.0
    %221 = vmatprep.subr.mxu0 0.0
    %222 = vmatpush1.msra.mxu0 0.0
    %223 = vmatprep.subr.mxu0 0.0
    %224 = vmatpush1.msra.mxu0 %v118
    %225 = vmatprep.subr.mxu0 0.0
    %226 = vmatpush2.msra.mxu0 0.0
    %227 = vmatprep.subr.mxu0 0.0
    %228 = vmatpush2.msra.mxu0 0.0
    %229 = vmatprep.subr.mxu0 0.0
    %230 = vmatpush2.msra.mxu0 0.0
    %231 = vmatprep.subr.mxu0 0.0
    %232 = vmatpush2.msra.mxu0 0.0
    %233 = vmatprep.subr.mxu0 0.0
    %234 = vmatpush2.msra.mxu0 0.0
    %235 = vmatprep.subr.mxu0 0.0
    %236 = vmatpush2.msra.mxu0 0.0
    %237 = vmatprep.subr.mxu0 0.0
    %238 = vmatpush2.msra.mxu0 0.0
    %239 = vmatprep.subr.mxu0 0.0
    %240 = vmatpush2.msra.mxu0 0.0
    %241 = vmatprep.subr.mxu0 0.0
    %242 = vmatpush2.msra.mxu0 0.0
    %243 = vmatprep.subr.mxu0 0.0
    %244 = vmatpush2.msra.mxu0 0.0
    %245 = vmatprep.subr.mxu0 0.0
    %246 = vmatpush2.msra.mxu0 0.0
    %247 = vmatprep.subr.mxu0 0.0
    %248 = vmatpush2.msra.mxu0 0.0
    %249 = vmatprep.subr.mxu0 0.0
    %250 = vmatpush2.msra.mxu0 0.0
    %251 = vmatprep.subr.mxu0 0.0
    %252 = vmatpush2.msra.mxu0 0.0
    %253 = vmatprep.subr.mxu0 0.0
    %254 = vmatpush2.msra.mxu0 0.0
    %255 = vmatprep.subr.mxu0 0.0
    %256 = vmatpush2.msra.mxu0 0.0
    %257 = vmatprep.mubr.f32.mxu0 0.0
    %258 = vmatmul.mubr.f32.gmra.mxu0 %v121
    %v259 = vpop.f32.mrf.mxu0
    %v260 = vadd.f32 0.0, %v259
    %v261 = vpop.f32.mrf.mxu0
    %262 = vdwg.mxu0
    %v263 = vmul.f32 %v104, %v104
    %v264 = vmul.f32 %v105, %v105
    %v265 = vmul.f32 %v263, -1000000.0
    %v266 = vmul.f32 %v264, -1000000.0
    %v267 = vmul.f32 %v265, 1.442695
    %v268 = vpow.pop %v267
    %v269 = vmul.f32 %v266, 1.442695
    %v270 = vpow.pop %v269
    %v271 = vmul.f32 %v268, %v104
    %v272 = vmul.f32 %v270, %v105
    %273 = vmatprep.subr.mxu0 0.0
    %274 = vmatpush1.msra.mxu0 0.0
    %275 = vmatprep.subr.mxu0 0.0
    %276 = vmatpush1.msra.mxu0 0.0
    %277 = vmatprep.subr.mxu0 0.0
    %278 = vmatpush1.msra.mxu0 0.0
    %279 = vmatprep.subr.mxu0 0.0
    %280 = vmatpush1.msra.mxu0 0.0
    %281 = vmatprep.subr.mxu0 0.0
    %282 = vmatpush1.msra.mxu0 0.0
    %283 = vmatprep.subr.mxu0 0.0
    %284 = vmatpush1.msra.mxu0 0.0
    %285 = vmatprep.subr.mxu0 0.0
    %286 = vmatpush1.msra.mxu0 0.0
    %287 = vmatprep.subr.mxu0 0.0
    %288 = vmatpush1.msra.mxu0 0.0
    %289 = vmatprep.subr.mxu0 0.0
    %290 = vmatpush1.msra.mxu0 0.0
    %291 = vmatprep.subr.mxu0 0.0
    %292 = vmatpush1.msra.mxu0 0.0
    %293 = vmatprep.subr.mxu0 0.0
    %294 = vmatpush1.msra.mxu0 0.0
    %295 = vmatprep.subr.mxu0 0.0
    %296 = vmatpush1.msra.mxu0 0.0
    %297 = vmatprep.subr.mxu0 0.0
    %298 = vmatpush1.msra.mxu0 0.0
    %299 = vmatprep.subr.mxu0 0.0
    %300 = vmatpush1.msra.mxu0 0.0
    %301 = vmatprep.subr.mxu0 0.0
    %302 = vmatpush1.msra.mxu0 0.0
    %303 = vmatprep.subr.mxu0 0.0
    %304 = vmatpush1.msra.mxu0 %v271
    %305 = vmatprep.subr.mxu0 0.0
    %306 = vmatpush2.msra.mxu0 0.0
    %307 = vmatprep.subr.mxu0 0.0
    %308 = vmatpush2.msra.mxu0 0.0
    %309 = vmatprep.subr.mxu0 0.0
    %310 = vmatpush2.msra.mxu0 0.0
    %311 = vmatprep.subr.mxu0 0.0
    %312 = vmatpush2.msra.mxu0 0.0
    %313 = vmatprep.subr.mxu0 0.0
    %314 = vmatpush2.msra.mxu0 0.0
    %315 = vmatprep.subr.mxu0 0.0
    %316 = vmatpush2.msra.mxu0 0.0
    %317 = vmatprep.subr.mxu0 0.0
    %318 = vmatpush2.msra.mxu0 0.0
    %319 = vmatprep.subr.mxu0 0.0
    %320 = vmatpush2.msra.mxu0 0.0
    %321 = vmatprep.subr.mxu0 0.0
    %322 = vmatpush2.msra.mxu0 0.0
    %323 = vmatprep.subr.mxu0 0.0
    %324 = vmatpush2.msra.mxu0 0.0
    %325 = vmatprep.subr.mxu0 0.0
    %326 = vmatpush2.msra.mxu0 0.0
    %327 = vmatprep.subr.mxu0 0.0
    %328 = vmatpush2.msra.mxu0 0.0
    %329 = vmatprep.subr.mxu0 0.0
    %330 = vmatpush2.msra.mxu0 0.0
    %331 = vmatprep.subr.mxu0 0.0
    %332 = vmatpush2.msra.mxu0 0.0
    %333 = vmatprep.subr.mxu0 0.0
    %334 = vmatpush2.msra.mxu0 0.0
    %335 = vmatprep.subr.mxu0 0.0
    %336 = vmatpush2.msra.mxu0 0.0
    %337 = vmatprep.mubr.f32.mxu0 0.0
    %338 = vmatmul.mubr.f32.gmra.mxu0 %v121
    %v339 = vpop.f32.mrf.mxu0
    %v340 = vadd.f32 0.0, %v339
    %v341 = vpop.f32.mrf.mxu0
    %342 = vdwg.mxu0
    %343 = vmatprep.subr.mxu0 0.0
    %344 = vmatpush1.msra.mxu0 0.0
    %345 = vmatprep.subr.mxu0 0.0
    %346 = vmatpush1.msra.mxu0 0.0
    %347 = vmatprep.subr.mxu0 0.0
    %348 = vmatpush1.msra.mxu0 0.0
    %349 = vmatprep.subr.mxu0 0.0
    %350 = vmatpush1.msra.mxu0 0.0
    %351 = vmatprep.subr.mxu0 0.0
    %352 = vmatpush1.msra.mxu0 0.0
    %353 = vmatprep.subr.mxu0 0.0
    %354 = vmatpush1.msra.mxu0 0.0
    %355 = vmatprep.subr.mxu0 0.0
    %356 = vmatpush1.msra.mxu0 0.0
    %357 = vmatprep.subr.mxu0 0.0
    %358 = vmatpush1.msra.mxu0 0.0
    %359 = vmatprep.subr.mxu0 0.0
    %360 = vmatpush1.msra.mxu0 0.0
    %361 = vmatprep.subr.mxu0 0.0
    %362 = vmatpush1.msra.mxu0 0.0
    %363 = vmatprep.subr.mxu0 0.0
    %364 = vmatpush1.msra.mxu0 0.0
    %365 = vmatprep.subr.mxu0 0.0
    %366 = vmatpush1.msra.mxu0 0.0
    %367 = vmatprep.subr.mxu0 0.0
    %368 = vmatpush1.msra.mxu0 0.0
    %369 = vmatprep.subr.mxu0 0.0
    %370 = vmatpush1.msra.mxu0 0.0
    %371 = vmatprep.subr.mxu0 0.0
    %372 = vmatpush1.msra.mxu0 0.0
    %373 = vmatprep.subr.mxu0 0.0
    %374 = vmatpush1.msra.mxu0 %v272
    %375 = vmatprep.subr.mxu0 0.0
    %376 = vmatpush2.msra.mxu0 0.0
    %377 = vmatprep.subr.mxu0 0.0
    %378 = vmatpush2.msra.mxu0 0.0
    %379 = vmatprep.subr.mxu0 0.0
    %380 = vmatpush2.msra.mxu0 0.0
    %381 = vmatprep.subr.mxu0 0.0
    %382 = vmatpush2.msra.mxu0 0.0
    %383 = vmatprep.subr.mxu0 0.0
    %384 = vmatpush2.msra.mxu0 0.0
    %385 = vmatprep.subr.mxu0 0.0
    %386 = vmatpush2.msra.mxu0 0.0
    %387 = vmatprep.subr.mxu0 0.0
    %388 = vmatpush2.msra.mxu0 0.0
    %389 = vmatprep.subr.mxu0 0.0
    %390 = vmatpush2.msra.mxu0 0.0
    %391 = vmatprep.subr.mxu0 0.0
    %392 = vmatpush2.msra.mxu0 0.0
    %393 = vmatprep.subr.mxu0 0.0
    %394 = vmatpush2.msra.mxu0 0.0
    %395 = vmatprep.subr.mxu0 0.0
    %396 = vmatpush2.msra.mxu0 0.0
    %397 = vmatprep.subr.mxu0 0.0
    %398 = vmatpush2.msra.mxu0 0.0
    %399 = vmatprep.subr.mxu0 0.0
    %400 = vmatpush2.msra.mxu0 0.0
    %401 = vmatprep.subr.mxu0 0.0
    %402 = vmatpush2.msra.mxu0 0.0
    %403 = vmatprep.subr.mxu0 0.0
    %404 = vmatpush2.msra.mxu0 0.0
    %405 = vmatprep.subr.mxu0 0.0
    %406 = vmatpush2.msra.mxu0 0.0
    %407 = vmatprep.mubr.f32.mxu0 0.0
    %408 = vmatmul.mubr.f32.gmra.mxu0 %v121
    %v409 = vpop.f32.mrf.mxu0
    %v410 = vadd.f32 0.0, %v409
    %v411 = vpop.f32.mrf.mxu0
    %412 = vdwg.mxu0
    %413 = vmatprep.subr.mxu0 0.0
    %414 = vmatpush1.msra.mxu0 0.0
    %415 = vmatprep.subr.mxu0 0.0
    %416 = vmatpush1.msra.mxu0 0.0
    %417 = vmatprep.subr.mxu0 0.0
    %418 = vmatpush1.msra.mxu0 0.0
    %419 = vmatprep.subr.mxu0 0.0
    %420 = vmatpush1.msra.mxu0 0.0
    %421 = vmatprep.subr.mxu0 0.0
    %422 = vmatpush1.msra.mxu0 0.0
    %423 = vmatprep.subr.mxu0 0.0
    %424 = vmatpush1.msra.mxu0 0.0
    %425 = vmatprep.subr.mxu0 0.0
    %426 = vmatpush1.msra.mxu0 0.0
    %427 = vmatprep.subr.mxu0 0.0
    %428 = vmatpush1.msra.mxu0 0.0
    %429 = vmatprep.subr.mxu0 0.0
    %430 = vmatpush1.msra.mxu0 0.0
    %431 = vmatprep.subr.mxu0 0.0
    %432 = vmatpush1.msra.mxu0 0.0
    %433 = vmatprep.subr.mxu0 0.0
    %434 = vmatpush1.msra.mxu0 0.0
    %435 = vmatprep.subr.mxu0 0.0
    %436 = vmatpush1.msra.mxu0 0.0
    %437 = vmatprep.subr.mxu0 0.0
    %438 = vmatpush1.msra.mxu0 0.0
    %439 = vmatprep.subr.mxu0 0.0
    %440 = vmatpush1.msra.mxu0 0.0
    %441 = vmatprep.subr.mxu0 0.0
    %442 = vmatpush1.msra.mxu0 0.0
    %443 = vmatprep.subr.mxu0 0.0
    %444 = vmatpush1.msra.mxu0 %v268
    %445 = vmatprep.subr.mxu0 0.0
    %446 = vmatpush2.msra.mxu0 0.0
    %447 = vmatprep.subr.mxu0 0.0
    %448 = vmatpush2.msra.mxu0 0.0
    %449 = vmatprep.subr.mxu0 0.0
    %450 = vmatpush2.msra.mxu0 0.0
    %451 = vmatprep.subr.mxu0 0.0
    %452 = vmatpush2.msra.mxu0 0.0
    %453 = vmatprep.subr.mxu0 0.0
    %454 = vmatpush2.msra.mxu0 0.0
    %455 = vmatprep.subr.mxu0 0.0
    %456 = vmatpush2.msra.mxu0 0.0
    %457 = vmatprep.subr.mxu0 0.0
    %458 = vmatpush2.msra.mxu0 0.0
    %459 = vmatprep.subr.mxu0 0.0
    %460 = vmatpush2.msra.mxu0 0.0
    %461 = vmatprep.subr.mxu0 0.0
    %462 = vmatpush2.msra.mxu0 0.0
    %463 = vmatprep.subr.mxu0 0.0
    %464 = vmatpush2.msra.mxu0 0.0
    %465 = vmatprep.subr.mxu0 0.0
    %466 = vmatpush2.msra.mxu0 0.0
    %467 = vmatprep.subr.mxu0 0.0
    %468 = vmatpush2.msra.mxu0 0.0
    %469 = vmatprep.subr.mxu0 0.0
    %470 = vmatpush2.msra.mxu0 0.0
    %471 = vmatprep.subr.mxu0 0.0
    %472 = vmatpush2.msra.mxu0 0.0
    %473 = vmatprep.subr.mxu0 0.0
    %474 = vmatpush2.msra.mxu0 0.0
    %475 = vmatprep.subr.mxu0 0.0
    %476 = vmatpush2.msra.mxu0 0.0
    %477 = vmatprep.mubr.f32.mxu0 0.0
    %478 = vmatmul.mubr.f32.gmra.mxu0 %v121
    %v479 = vpop.f32.mrf.mxu0
    %v480 = vadd.f32 0.0, %v479
    %v481 = vpop.f32.mrf.mxu0
    %482 = vdwg.mxu0
    %483 = vmatprep.subr.mxu0 0.0
    %484 = vmatpush1.msra.mxu0 0.0
    %485 = vmatprep.subr.mxu0 0.0
    %486 = vmatpush1.msra.mxu0 0.0
    %487 = vmatprep.subr.mxu0 0.0
    %488 = vmatpush1.msra.mxu0 0.0
    %489 = vmatprep.subr.mxu0 0.0
    %490 = vmatpush1.msra.mxu0 0.0
    %491 = vmatprep.subr.mxu0 0.0
    %492 = vmatpush1.msra.mxu0 0.0
    %493 = vmatprep.subr.mxu0 0.0
    %494 = vmatpush1.msra.mxu0 0.0
    %495 = vmatprep.subr.mxu0 0.0
    %496 = vmatpush1.msra.mxu0 0.0
    %497 = vmatprep.subr.mxu0 0.0
    %498 = vmatpush1.msra.mxu0 0.0
    %499 = vmatprep.subr.mxu0 0.0
    %500 = vmatpush1.msra.mxu0 0.0
    %501 = vmatprep.subr.mxu0 0.0
    %502 = vmatpush1.msra.mxu0 0.0
    %503 = vmatprep.subr.mxu0 0.0
    %504 = vmatpush1.msra.mxu0 0.0
    %505 = vmatprep.subr.mxu0 0.0
    %506 = vmatpush1.msra.mxu0 0.0
    %507 = vmatprep.subr.mxu0 0.0
    %508 = vmatpush1.msra.mxu0 0.0
    %509 = vmatprep.subr.mxu0 0.0
    %510 = vmatpush1.msra.mxu0 0.0
    %511 = vmatprep.subr.mxu0 0.0
    %512 = vmatpush1.msra.mxu0 0.0
    %513 = vmatprep.subr.mxu0 0.0
    %514 = vmatpush1.msra.mxu0 %v270
    %515 = vmatprep.subr.mxu0 0.0
    %516 = vmatpush2.msra.mxu0 0.0
    %517 = vmatprep.subr.mxu0 0.0
    %518 = vmatpush2.msra.mxu0 0.0
    %519 = vmatprep.subr.mxu0 0.0
    %520 = vmatpush2.msra.mxu0 0.0
    %521 = vmatprep.subr.mxu0 0.0
    %522 = vmatpush2.msra.mxu0 0.0
    %523 = vmatprep.subr.mxu0 0.0
    %524 = vmatpush2.msra.mxu0 0.0
    %525 = vmatprep.subr.mxu0 0.0
    %526 = vmatpush2.msra.mxu0 0.0
    %527 = vmatprep.subr.mxu0 0.0
    %528 = vmatpush2.msra.mxu0 0.0
    %529 = vmatprep.subr.mxu0 0.0
    %530 = vmatpush2.msra.mxu0 0.0
    %531 = vmatprep.subr.mxu0 0.0
    %532 = vmatpush2.msra.mxu0 0.0
    %533 = vmatprep.subr.mxu0 0.0
    %534 = vmatpush2.msra.mxu0 0.0
    %535 = vmatprep.subr.mxu0 0.0
    %536 = vmatpush2.msra.mxu0 0.0
    %537 = vmatprep.subr.mxu0 0.0
    %538 = vmatpush2.msra.mxu0 0.0
    %539 = vmatprep.subr.mxu0 0.0
    %540 = vmatpush2.msra.mxu0 0.0
    %541 = vmatprep.subr.mxu0 0.0
    %542 = vmatpush2.msra.mxu0 0.0
    %543 = vmatprep.subr.mxu0 0.0
    %544 = vmatpush2.msra.mxu0 0.0
    %545 = vmatprep.subr.mxu0 0.0
    %546 = vmatpush2.msra.mxu0 0.0
    %547 = vmatprep.mubr.f32.mxu0 0.0
    %548 = vmatmul.mubr.f32.gmra.mxu0 %v121
    %v549 = vpop.f32.mrf.mxu0
    %v550 = vadd.f32 0.0, %v549
    %v551 = vpop.f32.mrf.mxu0
    %552 = vdwg.mxu0
    %v553 = vrcp.pop %v480
    %v554 = vmul.f32 %v340, %v553
    %v555 = vrcp.pop %v550
    %v556 = vmul.f32 %v410, %v555
    %v557 = vadd.f32 %v84, %v554
    %v558 = vadd.f32 %v91, %v556
    %v559 = vlaneseq
    %v560 = vshrl.u32 %v559, 7
    %v561 = vsub.s32 0, %v560
    %v562 = vrot.slane %v190, %v561
    %v563 = vlaneseq
    %v564 = vshrl.u32 %v563, 7
    %v565 = vsub.s32 0, %v564
    %v566 = vrot.slane %v260, %v565
    %vm567 = vcmp.eq.f32.partialorder %v562, %v46
    %vm568 = vcmp.eq.f32.partialorder %v566, %v46
    %v569 = vsel %vm54, 1, 0
    %vm570 = vcmp.eq.s32.totalorder %v569, 1
    %vm571 = vmand %vm567, %vm570
    %vm572 = vmand %vm568, %vm570
    %v575 = vlaneseq
    %v576 = vshrl.u32 %v575, 7
    %v577 = vsub.s32 0, %v576
    %v578 = vrot.slane %v557, %v577
    %v579 = vlaneseq
    %v580 = vshrl.u32 %v579, 7
    %v581 = vsub.s32 0, %v580
    %v582 = vrot.slane %v558, %v581
    %v585 = vsel %vm571, %v578, 0.0
    %v586 = vsel %vm572, %v582, 0.0
    %v587 = vsel %vm119, %v585, 0.0
    %588 = vadd.xlane.f32.xlu0 %v587
    %v589 = vpop.xlane.xlu0 %588
    %v590 = vsel %vm119, %v586, 0.0
    %591 = vadd.xlane.f32.xlu0 %v590
    %v592 = vpop.xlane.xlu0 %591
    %v593 = vld [vmem:[#allocation7] sm:$0x3]
    %v596 = vlaneseq
    %v597 = vshrl.u32 %v596, 7
    %v598 = vsub.s32 %v48, %v597
    %v599 = vrot.slane %v589, %v598
    %v600 = vlaneseq
    %v601 = vshrl.u32 %v600, 7
    %v602 = vsub.s32 %v48, %v601
    %v603 = vrot.slane %v592, %v602
    %vm604 = vcmask 1041409
    %v605 = vsel %vm604, %v603, %v599
    %v607 = vadd.f32 %v593, %v605
    %vm608 = vcmask 58368
    %609 = vst.msk [vmem:[#allocation7] sm:$0x3] %vm608, %v607
    // Predicated region
    $region22: #{tpu_custom_call.1} parent=1 // pred_check
      _
    $region23: #{tpu_custom_call.1} parent=1 // pred_check_branch
      %611 = sbr.rel (0) target = $region25
    $region24: #{tpu_custom_call.1} parent=1 // pred_region
      %s613 = ssub.s32 32, 32
      %614 = vsyncadd [#allocation4], %s613
      %s616 = sshll.u32 [#allocation7], 4
      %s617 = int_to_ptr.vmem [resolvable:$true] %s616
      %619 = dma.vmem_to_hbm [thread:$0]  %s617, 32, %s2, [#allocation4]
    $region25: #{tpu_custom_call.1} parent=1 // pred_fallthru
      _
    // Predicated region
    $region26: #{tpu_custom_call.1} parent=1 // pred_check
      _
    $region27: #{tpu_custom_call.1} parent=1 // pred_check_branch
      %621 = sbr.rel (0) target = $region29
    $region28: #{tpu_custom_call.1} parent=1 // pred_region
      %622 = dma.done [#allocation4], 32
    $region29: #{tpu_custom_call.1} parent=1 // pred_fallthru
      _
    %623 = vsyncpa [#allocation3], 1
    %624 = vsyncpa [#allocation6], 1
    %625 = vsyncpa [#allocation4], 1

</llo_original>
